<compile_context>
chip_gen: v5e
topology: v5e:2x2
jax: 0.10.0
libtpu: 0.0.40
codegen_flags: <defaults>
</compile_context>

<pallas_src>
import jax
import jax.numpy as jnp
from jax import lax
from jax.experimental import pallas as pl
from jax.experimental.pallas import tpu as pltpu

_BLOCK_BUDGET_BYTES = 12 * 1024 * 1024   # HBM->VMEM input bytes per grid step
_CHUNK_TEMP_BYTES = 1 * 1024 * 1024      # bound on the widened per-chunk temp
_VMEM_LIMIT_BYTES = 48 * 1024 * 1024     # < v7x 64 MiB physical; fine on v5e/v6e


def _round_up(x: int, m: int) -> int:
    return ((x + m - 1) // m) * m


def _round_down(x: int, m: int) -> int:
    return (x // m) * m


def _cdiv(a: int, b: int) -> int:
    return (a + b - 1) // b


def _make_pool_kernel(mode, *, seq_len, block_s, chunk_s, n_full, rem,
                      acc_dtype, identity, needs_mask, sub, inv_seq_len):
    """Kernel reducing the S axis of (block_b, block_s, block_h) tiles."""

    def kernel(x_ref, o_ref, acc_ref):
        s_id = pl.program_id(2)

        @pl.when(s_id == 0)
        def _init():
            acc_ref[...] = jnp.full(acc_ref.shape, identity, acc_ref.dtype)

        def accumulate(start, size):
            # Widen only a small chunk at a time (keeps the temp ~<=1 MiB).
            x = x_ref[:, pl.ds(start, size), :].astype(acc_dtype)
            if needs_mask:
                # Global row index; rows >= seq_len get the reduction identity.
                rows = (s_id * block_s + start
                        + lax.broadcasted_iota(jnp.int32, (1, size, 1), 1))
                x = jnp.where(rows < seq_len, x, jnp.asarray(identity, acc_dtype))
            if mode == "max":
                acc_ref[...] = jnp.maximum(acc_ref[...], jnp.max(x, axis=1))
            else:  # 'sum' or 'mean'
                acc_ref[...] = acc_ref[...] + jnp.sum(x, axis=1)

        if n_full == 1:
            accumulate(0, chunk_s)
        elif n_full > 1:
            def body(i, carry):
                accumulate(pl.multiple_of(i * chunk_s, sub), chunk_s)
                return carry
            lax.fori_loop(0, n_full, body, 0)
        if rem > 0:
            accumulate(n_full * chunk_s, rem)

        @pl.when(s_id == pl.num_programs(2) - 1)
        def _finalize():
            r = acc_ref[...]
            if mode == "mean":
                r = r.astype(jnp.float32) * inv_seq_len   # scale once, in f32
            o_ref[...] = r.astype(o_ref.dtype)

    return kernel


def pooling_forward(inputs: jax.Array,
                    mode: str = "max",
                    dropout_prob: float = 0.0,
                    *,
                    training: bool = False,
                    block_b: int | None = None,
                    block_s: int | None = None,
                    block_h: int | None = None,
                    chunk_s: int | None = None) -> jax.Array:
    """Pallas equivalent of Pooling.forward(inputs).  inputs: [B,S,H] -> [B,H]."""
    if mode not in ("mean", "sum"):
        mode = "max"   # matches the PyTorch module: anything else -> max

    # Inference-mode dropout is an identity for any p (and p=0 always is).
    # TODO(synk): training-mode dropout (p>0) could be fused in-kernel via
    # pltpu.prng_seed / pltpu.prng_random_bits; not wired up.
    if training and dropout_prob > 0.0:
        raise NotImplementedError("training-mode dropout (p > 0) not implemented")

    B, S, H = inputs.shape
    dtype = inputs.dtype
    itemsize = jnp.dtype(dtype).itemsize
    floating = jnp.issubdtype(dtype, jnp.floating)

    # Accumulator dtype + reduction identity.
    if mode == "max":
        acc_dtype = dtype if floating else jnp.int32   # max is exact in-source
        identity = -jnp.inf if floating else int(jnp.iinfo(jnp.int32).min)
    elif mode == "sum" and not floating:
        acc_dtype, identity = jnp.int32, 0              # exact integer sum
    else:
        acc_dtype, identity = jnp.float32, 0.0          # f32 sum/mean
    acc_itemsize = jnp.dtype(acc_dtype).itemsize

    sub = {4: 8, 2: 16, 1: 32}.get(itemsize, 8)         # sublane packing

    # ---- batch tile --------------------------------------------------------
    if block_b is None:
        block_b = sub
    block_b = min(int(block_b), B)
    if block_b < B:                       # must be 8-aligned unless full dim
        block_b = min(B, max(8, _round_down(block_b, 8)))
    b_blocks = _cdiv(B, block_b)

    # ---- hidden tile -------------------------------------------------------
    if block_h is None:
        block_h = H
        # (a) cap block_h so one (block_b, sub, block_h) slab fits the budget.
        cap = max(128, _round_down(
            _BLOCK_BUDGET_BYTES // max(1, block_b * sub * itemsize), 128))
        if H > cap:
            block_h = cap
        # (b) v7x megacore: guarantee >=2 "parallel" grid steps when the batch
        #     axis only yields one (harmless on 1-TC chips: per-step bytes are
        #     re-budgeted below). Only possible when H can split 128-aligned.
        elif b_blocks < 2 and H >= 256:
            block_h = _round_up(_cdiv(H, 2), 128)
    else:
        block_h = min(int(block_h), H)
        if block_h < H:
            block_h = min(H, max(128, _round_down(block_h, 128)))
    h_blocks = _cdiv(H, block_h)

    # ---- sequence tile & in-kernel chunk ------------------------------------
    if chunk_s is None:
        chunk_s = _CHUNK_TEMP_BYTES // max(1, block_b * block_h * acc_itemsize)
    chunk_s = max(sub, _round_down(int(chunk_s), sub))

    if block_s is None:
        n_chunks = max(1, _BLOCK_BUDGET_BYTES
                       // max(1, block_b * chunk_s * block_h * itemsize))
        block_s = chunk_s * n_chunks
    block_s = int(block_s)
    if block_s >= S:
        block_s = S                                  # full-dim exception
    else:
        block_s = min(S, max(sub, _round_down(block_s, sub)))
    chunk_s = max(1, min(chunk_s, block_s))

    n_full = block_s // chunk_s
    rem = block_s - n_full * chunk_s
    s_blocks = _cdiv(S, block_s)
    needs_mask = (S % block_s) != 0                  # last s-block is partial

    kernel = _make_pool_kernel(
        mode, seq_len=S, block_s=block_s, chunk_s=chunk_s, n_full=n_full,
        rem=rem, acc_dtype=acc_dtype, identity=identity,
        needs_mask=needs_mask, sub=sub, inv_seq_len=1.0 / S)

    cost = pl.CostEstimate(
        flops=B * S * H, transcendentals=0,
        bytes_accessed=B * S * H * itemsize + B * H * itemsize)

    out = pl.pallas_call(
        kernel,
        out_shape=jax.ShapeDtypeStruct((B, H), dtype),
        grid_spec=pltpu.PrefetchScalarGridSpec(
            num_scalar_prefetch=0,
            grid=(b_blocks, h_blocks, s_blocks),
            in_specs=[pl.BlockSpec((block_b, block_s, block_h),
                                   lambda b, h, s: (b, s, h))],
            out_specs=pl.BlockSpec((block_b, block_h), lambda b, h, s: (b, h)),
            scratch_shapes=[pltpu.VMEM((block_b, block_h), acc_dtype)],
        ),
        compiler_params=pltpu.CompilerParams(
            dimension_semantics=("parallel", "parallel", "arbitrary"),
            vmem_limit_bytes=_VMEM_LIMIT_BYTES),
        cost_estimate=cost,
    )(inputs)
    return out


def _ref_pool(inputs, mode):
    if mode not in ("mean", "sum"):
        mode = "max"
    x32 = inputs.astype(jnp.float32)
    if mode == "mean":
        return jnp.mean(x32, axis=1).astype(inputs.dtype)
    if mode == "sum":
        return jnp.sum(x32, axis=1).astype(inputs.dtype)
    return jnp.max(x32, axis=1).astype(inputs.dtype)


if __name__ == "__main__":
    k0, k1, k2, k3 = jax.random.split(jax.random.PRNGKey(0), 4)
    results = []

    def check(x, mode, **kw):
        y = jax.block_until_ready(pooling_forward(x, mode=mode, **kw))
        ref = _ref_pool(x, mode)
        if y.shape != ref.shape or y.dtype != ref.dtype:
            return False
        tol = 1e-5 if x.dtype == jnp.float32 else 1.5e-2
        return bool(jnp.allclose(y.astype(jnp.float32), ref.astype(jnp.float32),
                                 atol=tol, rtol=tol))

    # Basic path (small shapes implied by the module: B=2, S=8, H=32).
    x_f32 = jax.random.normal(k0, (2, 8, 32), dtype=jnp.float32)
    x_bf16 = x_f32.astype(jnp.bfloat16)
    for x in (x_f32, x_bf16):
        for mode in ("max", "mean", "sum"):
            results.append(check(x, mode))

    # Multi-step reduction grid + in-kernel S-remainder masking.
    xm = jax.random.normal(k1, (2, 20, 32), dtype=jnp.float32)
    for mode in ("max", "mean"):
        results.append(check(xm, mode, block_s=8))                 # 3 s-steps, mask
        results.append(check(xm.astype(jnp.bfloat16), mode, block_s=16))
    # Chunked fori_loop + remainder chunk within a single block.
    for mode in ("max", "sum"):
        results.append(check(xm, mode, chunk_s=8))                 # n_full=2, rem=4

    # Hidden-axis split (>=2 parallel grid steps) with a partial last H block.
    xh = jax.random.normal(k2, (2, 16, 384), dtype=jnp.float32)
    for mode in ("max", "mean"):
        results.append(check(xh, mode))

    # Partial trailing batch block (B not a multiple of block_b).
    xb = jax.random.normal(k3, (10, 24, 32), dtype=jnp.float32)
    results.append(check(xb, "sum"))

    if all(results):
        print("KERNEL_OK")
    else:
        print("KERNEL_FAILED", results)
</pallas_src>

<mosaic_0001>
module attributes {stable_mosaic.version = 11 : i64} {
  func.func @kernel(%arg0: i32, %arg1: i32, %arg2: i32, %arg3: memref<2x8x32xf32, #tpu.memory_space<vmem>>, %arg4: memref<2x32xf32, #tpu.memory_space<vmem>>, %arg5: memref<2x32xf32, #tpu.memory_space<vmem>>) attributes {dimension_semantics = [#tpu.dimension_semantics<parallel>, #tpu.dimension_semantics<parallel>, #tpu.dimension_semantics<arbitrary>], iteration_bounds = array<i64: 1, 1, 1>, scalar_prefetch = 0 : i64, scratch_operands = 1 : i64, tpu.core_type = #tpu.core_type<tc>, window_params = [{transform_indices = @transform_0, window_bounds = array<i64: 2, 8, 32>}, {transform_indices = @transform_1, window_bounds = array<i64: 2, 32>}]} {
    %c0_i32 = arith.constant 0 : i32
    %0 = arith.cmpi eq, %arg2, %c0_i32 : i32
    %1 = arith.extui %0 : i1 to i32
    %c0_i32_0 = arith.constant 0 : i32
    %2 = arith.cmpi ne, %1, %c0_i32_0 : i32
    scf.if %2 {
      %cst_9 = arith.constant 0xFF800000 : f32
      %11 = vector.broadcast %cst_9 : f32 to vector<2x32xf32>
      %c0_10 = arith.constant 0 : index
      %c0_11 = arith.constant 0 : index
      %12 = vector.load %arg5[%c0_10, %c0_11] : memref<2x32xf32, #tpu.memory_space<vmem>>, vector<2x32xf32>
      tpu.vector_store %arg5[%c0_10, %c0_11], %11 {strides = array<i32>} : memref<2x32xf32, #tpu.memory_space<vmem>>, vector<2x32xf32>,
    } else {
    }
    %c0 = arith.constant 0 : index
    %c0_1 = arith.constant 0 : index
    %c0_2 = arith.constant 0 : index
    %3 = vector.load %arg3[%c0, %c0_1, %c0_2] : memref<2x8x32xf32, #tpu.memory_space<vmem>>, vector<2x8x32xf32>
    %c0_3 = arith.constant 0 : index
    %c0_4 = arith.constant 0 : index
    %4 = vector.load %arg5[%c0_3, %c0_4] : memref<2x32xf32, #tpu.memory_space<vmem>>, vector<2x32xf32>
    %cst = arith.constant dense<0xFF800000> : vector<2x32xf32>
    %5 = vector.multi_reduction <maximumf>, %3, %cst [1] : vector<2x8x32xf32> to vector<2x32xf32>
    %6 = arith.maximumf %4, %5 : vector<2x32xf32>
    %c0_5 = arith.constant 0 : index
    %c0_6 = arith.constant 0 : index
    %7 = vector.load %arg5[%c0_5, %c0_6] : memref<2x32xf32, #tpu.memory_space<vmem>>, vector<2x32xf32>
    tpu.vector_store %arg5[%c0_5, %c0_6], %6 {strides = array<i32>} : memref<2x32xf32, #tpu.memory_space<vmem>>, vector<2x32xf32>,
    %c0_i32_7 = arith.constant 0 : i32
    %8 = arith.cmpi eq, %arg2, %c0_i32_7 : i32
    %9 = arith.extui %8 : i1 to i32
    %c0_i32_8 = arith.constant 0 : i32
    %10 = arith.cmpi ne, %9, %c0_i32_8 : i32
    scf.if %10 {
      %c0_9 = arith.constant 0 : index
      %c0_10 = arith.constant 0 : index
      %11 = vector.load %arg5[%c0_9, %c0_10] : memref<2x32xf32, #tpu.memory_space<vmem>>, vector<2x32xf32>
      %c0_11 = arith.constant 0 : index
      %c0_12 = arith.constant 0 : index
      %12 = vector.load %arg4[%c0_11, %c0_12] : memref<2x32xf32, #tpu.memory_space<vmem>>, vector<2x32xf32>
      tpu.vector_store %arg4[%c0_11, %c0_12], %11 {strides = array<i32>} : memref<2x32xf32, #tpu.memory_space<vmem>>, vector<2x32xf32>,
    } else {
    }
    return
  }
  func.func @transform_0(%arg0: i32, %arg1: i32, %arg2: i32) -> (i32, i32, i32) {
    %c0_i32 = arith.constant 0 : i32
    return %arg0, %arg2, %arg1 : i32, i32, i32
  }
  func.func @transform_1(%arg0: i32, %arg1: i32, %arg2: i32) -> (i32, i32) {
    %c0_i32 = arith.constant 0 : i32
    return %arg0, %arg1 : i32, i32
  }
}

</mosaic_0001>

<llo_original>
// kernel: tpu_custom_call.1
$region0: #{tpu_custom_call.1}
  #allocation0 [shape = 'u32[]', space=smem, size = 0x4, offset = 0x4, fixed_abs, tag = 'smem constant byte address 0x4 - core index']
  #allocation1 [shape = 'u32[72,128]{1,0:T(1,128)}', space=vmem, size = 0x9000, scoped, tag = 'internal scratch']
  #allocation2 [shape = 'f32[2,32]{1,0:T(2,128)}', space=vmem, size = 0x400, scoped, tag = 'scratch operand']
  %s0 = inlined_call_operand.hbm [shape: f32[2,8,32], index: 0, kind: input, shape index: {}]
  %s1 = inlined_call_operand.hbm [shape: f32[2,32], index: 1, kind: output, shape index: {}]
  %s2 = sld [smem:[#allocation0]]
  $region26: #{tpu_custom_call.1} parent=0
    _
  %s4 = ssub.s32 1, %s2
  %s5 = scalar_select 0, %s4, %s2
  $region1: #{tpu_custom_call.1} parent=0
    #allocation3 [shape = 'u8[8192]{0}', space=vmem, size = 0x2000, scoped, tag = 'input window, operand 0, single buffered']
    #allocation4 [shape = 's32[1]{0}', space=sflag, size = 0x4, scoped, tag = 'scoped memory for tpu_custom_call.1']
    #allocation5 [shape = 's32[1]{0}', space=sflag, size = 0x4, scoped, tag = 'scoped memory for tpu_custom_call.1']
    #allocation6 [shape = 'u8[1024]{0}', space=vmem, size = 0x400, scoped, tag = 'output window, operand 0, single buffered']
    %6 = vsyncpa [#allocation4], 0
    %7 = vsyncpa [#allocation5], 0
    // Predicated region
    $region2: #{tpu_custom_call.1} parent=1 // pred_check
      _
    $region3: #{tpu_custom_call.1} parent=1 // pred_check_branch
      %9 = sbr.rel (0) target = $region5
    $region4: #{tpu_custom_call.1} parent=1 // pred_region
      %11 = vsyncadd [#allocation4], 0
      %s12 = sshll.u32 %s0, 4
      %s13 = int_to_ptr.hbm [resolvable:$true] %s12
      %s14 = sshll.u32 [#allocation3], 4
      %s15 = int_to_ptr.vmem [resolvable:$true] %s14
      %20 = dma.hbm_to_vmem [thread:$0]  %s13, 256, %s15, [#allocation4], 128, 128, 8
    $region5: #{tpu_custom_call.1} parent=1 // pred_fallthru
      _
    // Predicated region
    $region6: #{tpu_custom_call.1} parent=1 // pred_check
      _
    $region7: #{tpu_custom_call.1} parent=1 // pred_check_branch
      %22 = sbr.rel (0) target = $region9
    $region8: #{tpu_custom_call.1} parent=1 // pred_region
      %24 = dma.done [#allocation4], 256
    $region9: #{tpu_custom_call.1} parent=1 // pred_fallthru
      _
    %p25 = scmp.eq.s32.totalorder 0, 0
    // Predicated region
    $region10: #{tpu_custom_call.1} parent=1 // pred_check
      %p26 = pneg %p25
    $region11: #{tpu_custom_call.1} parent=1 // pred_check_branch
      %28 = sbr.rel (%p26) target = $region13
    $region12: #{tpu_custom_call.1} parent=1 // pred_region
      %vm29 = vcmask 254976
      %30 = vst.msk [vmem:[#allocation2] sm:$0x3] %vm29, -inf
    $region13: #{tpu_custom_call.1} parent=1 // pred_fallthru
      _
    %v31 = vld [vmem:[#allocation3] sm:$0xff]
    %v32 = vld [vmem:[#allocation3 + $0x8] sm:$0xff]
    %v33 = vld [vmem:[#allocation2] sm:$0x3]
    %vm34 = vcmask 261120
    %v35 = vsel %vm34, %v31, -inf
    %v36 = vrot.slane %v35, 4
    %v37 = vmax.f32 %v35, %v36
    %v38 = vrot.slane %v37, 2
    %v39 = vmax.f32 %v37, %v38
    %v40 = vrot.slane %v39, 1
    %v41 = vmax.f32 %v39, %v40
    %v42 = vsel %vm34, %v32, -inf
    %v43 = vrot.slane %v42, 4
    %v44 = vmax.f32 %v42, %v43
    %v45 = vrot.slane %v44, 2
    %v46 = vmax.f32 %v44, %v45
    %v47 = vrot.slane %v46, 1
    %v48 = vmax.f32 %v46, %v47
    %vm51 = vcmask 1041409
    %v52 = vsel %vm51, %v48, %v41
    %v54 = vmax.f32 %v33, %v52
    %vm55 = vcmask 254976
    %56 = vst.msk [vmem:[#allocation2] sm:$0x3] %vm55, %v54
    // Predicated region
    $region14: #{tpu_custom_call.1} parent=1 // pred_check
      %p57 = pneg %p25
    $region15: #{tpu_custom_call.1} parent=1 // pred_check_branch
      %59 = sbr.rel (%p57) target = $region17
    $region16: #{tpu_custom_call.1} parent=1 // pred_region
      %v60 = vld [vmem:[#allocation2] sm:$0x3]
      %61 = vst.msk [vmem:[#allocation6] sm:$0x3] %vm55, %v60
    $region17: #{tpu_custom_call.1} parent=1 // pred_fallthru
      _
    // Predicated region
    $region18: #{tpu_custom_call.1} parent=1 // pred_check
      _
    $region19: #{tpu_custom_call.1} parent=1 // pred_check_branch
      %63 = sbr.rel (0) target = $region21
    $region20: #{tpu_custom_call.1} parent=1 // pred_region
      %65 = vsyncadd [#allocation5], 0
      %s67 = sshll.u32 [#allocation6], 4
      %s68 = int_to_ptr.vmem [resolvable:$true] %s67
      %s69 = sshll.u32 %s1, 4
      %s70 = int_to_ptr.hbm [resolvable:$true] %s69
      %72 = dma.vmem_to_hbm [thread:$0]  %s68, 32, %s70, [#allocation5]
    $region21: #{tpu_custom_call.1} parent=1 // pred_fallthru
      _
    // Predicated region
    $region22: #{tpu_custom_call.1} parent=1 // pred_check
      _
    $region23: #{tpu_custom_call.1} parent=1 // pred_check_branch
      %74 = sbr.rel (0) target = $region25
    $region24: #{tpu_custom_call.1} parent=1 // pred_region
      %76 = dma.done [#allocation5], 32
    $region25: #{tpu_custom_call.1} parent=1 // pred_fallthru
      _
    %77 = vsyncpa [#allocation4], 1
    %78 = vsyncpa [#allocation5], 1

</llo_original>
